<compile_context>
chip_gen: v6e
topology: v6e:2x2x1
jax: 0.10.0
libtpu: 0.0.40
codegen_flags: <defaults>
</compile_context>

<pallas_src>
import functools

import jax
import jax.numpy as jnp
from jax import lax
from jax.experimental import pallas as pl
from jax.experimental.pallas import tpu as pltpu


def mlp_kernel(x_ref, w1_ref, b1_ref, w2_ref, b2_ref, w3_ref, b3_ref, o_ref,
               *, batch, tb):
    """One batch tile. Activations are (features, batch): batch on lanes.

    x_ref : (tb, D)   f32 (cast to MXU dtype inside the kernel)
    w1_ref: (H1, D)   bf16 (PyTorch [out, in] layout)
    b1_ref: (H1, 1)   f32
    w2_ref: (H2, H1)  bf16
    b2_ref: (H2, 1)   f32
    w3_ref: (1, H2)   f32 (output-layer weight as a row)
    b3_ref: (1, 1)    f32
    o_ref : (1, tb)   f32 (lane-dense output, batch along lanes)
    """
    x = x_ref[...]                                               # (tb, D) f32

    # Ragged tail: the last block may over-cover the batch; zero those rows so
    # nothing undefined flows through the math (their outputs are masked on
    # store anyway).  Only traced when the grid actually has a ragged tail.
    if batch % tb != 0:
        rows = lax.broadcasted_iota(jnp.int32, x.shape, 0) + pl.program_id(0) * tb
        x = jnp.where(rows < batch, x, 0.0)

    x_mxu = x.astype(w1_ref.dtype)                               # VPU cast, hidden under DMA

    # h1[o, b] = sum_d W1[o, d] * x[b, d]  -> (H1, tb), f32 accumulation on MXU.
    h1 = lax.dot_general(
        w1_ref[...], x_mxu,
        dimension_numbers=(((1,), (1,)), ((), ())),
        preferred_element_type=jnp.float32)
    h1 = jnp.maximum(h1 + b1_ref[...], 0.0)                      # (H1, tb) f32

    # h2 = relu(W2 @ h1 + b2)              -> (H2, tb)
    h2 = jnp.dot(w2_ref[...], h1.astype(w2_ref.dtype),
                 preferred_element_type=jnp.float32)
    h2 = jnp.maximum(h2 + b2_ref[...], 0.0)                      # (H2, tb) f32

    # Output layer (single unit) on the MXU: (1,H2) @ (H2,tb).  MXU has huge
    # slack here; this keeps the 64*tb multiplies off the (binding) VALU.
    logit = jnp.dot(w3_ref[...], h2,
                    preferred_element_type=jnp.float32) + b3_ref[...]
    o_ref[...] = jax.nn.sigmoid(logit)                           # (1, tb) f32


def _round_up(n, m):
    return -(-n // m) * m


def mlp_forward(x, params, *, tb=8192, mxu_dtype=jnp.bfloat16,
                vmem_limit_bytes=None):
    """Pallas MLP forward.

    x: (B, D) f32. params in PyTorch layout:
      w1 (H1, D), b1 (H1,), w2 (H2, H1), b2 (H2,), w3 (1, H2), b3 (1,).
    Returns (B, 1) f32 = sigmoid(out(relu(h2(relu(h1(x)))))).
    """
    w1, b1, w2, b2, w3, b3 = params
    B, D = x.shape
    H1 = w1.shape[0]
    H2 = w2.shape[0]

    # Tile selection:
    #  * tiny batches -> one block covering the whole batch (block == array dim
    #    is always a legal block shape);
    #  * otherwise: multiple of 128 (lane-dense output), capped so the grid has
    #    at least 2 steps (keeps both v7x TensorCores busy), capped by request.
    if B <= 256:
        tb = B
    else:
        tb = min(_round_up(tb, 128), _round_up(pl.cdiv(B, 2), 128))
    grid_len = pl.cdiv(B, tb)

    # One-time wrapper-side casts of the (tiny) weights only — x is NOT
    # re-streamed through HBM for a cast or a pad.
    w1_k = w1.astype(mxu_dtype)
    w2_k = w2.astype(mxu_dtype)
    b1_k = b1.reshape(H1, 1).astype(jnp.float32)
    b2_k = b2.reshape(H2, 1).astype(jnp.float32)
    w3_k = w3.reshape(1, H2).astype(jnp.float32)
    b3_k = b3.reshape(1, 1).astype(jnp.float32)

    if vmem_limit_bytes is None:
        # Rough live bytes per tile: lane-padded f32/bf16 x buffers (double
        # buffered), f32 + bf16 h1/h2, output buffers.  Cap at 48 MiB so the
        # default is safe on v7x's 64 MiB physical VMEM.
        per_tile = tb * (2 * 128 * 4 + 128 * 2            # x f32 (x2) + bf16 copy
                         + H1 * (4 + 2) + H2 * 4          # h1 f32+bf16, h2 f32
                         + 2 * 8 * 4)                     # out (x2, sublane-padded)
        vmem_limit_bytes = max(32 << 20, min(2 * per_tile, 48 << 20))

    cost = pl.CostEstimate(
        flops=int(2 * B * (D * H1 + H1 * H2 + H2)),
        transcendentals=int(B),
        bytes_accessed=int(B * (D * 4 + 4)
                           + (H1 * D + H2 * H1) * 2
                           + (H1 + H2 + H2 + 1) * 4),
    )

    kernel = functools.partial(mlp_kernel, batch=B, tb=tb)

    out_t = pl.pallas_call(
        kernel,
        out_shape=jax.ShapeDtypeStruct((1, B), jnp.float32),
        grid_spec=pltpu.PrefetchScalarGridSpec(
            num_scalar_prefetch=0,
            grid=(grid_len,),
            in_specs=[
                pl.BlockSpec((tb, D), lambda i: (i, 0)),    # x tile (batch-tiled)
                pl.BlockSpec((H1, D), lambda i: (0, 0)),    # W1 (resident)
                pl.BlockSpec((H1, 1), lambda i: (0, 0)),    # b1
                pl.BlockSpec((H2, H1), lambda i: (0, 0)),   # W2 (resident)
                pl.BlockSpec((H2, 1), lambda i: (0, 0)),    # b2
                pl.BlockSpec((1, H2), lambda i: (0, 0)),    # w3 row
                pl.BlockSpec((1, 1), lambda i: (0, 0)),     # b3
            ],
            out_specs=pl.BlockSpec((1, tb), lambda i: (0, i)),
        ),
        compiler_params=pltpu.CompilerParams(
            dimension_semantics=("parallel",),
            vmem_limit_bytes=int(vmem_limit_bytes),
        ),
        cost_estimate=cost,
    )(x, w1_k, b1_k, w2_k, b2_k, w3_k, b3_k)

    # (1, B) -> (B, 1): pure layout plumbing at the XLA level.
    return out_t.reshape(B, 1)


def init_linear(key, fan_in, fan_out):
    """PyTorch nn.Linear init: U(-1/sqrt(fan_in), 1/sqrt(fan_in)), [out, in] weight."""
    kw, kb = jax.random.split(key)
    bound = 1.0 / jnp.sqrt(float(fan_in))
    w = jax.random.uniform(kw, (fan_out, fan_in), jnp.float32, -bound, bound)
    b = jax.random.uniform(kb, (fan_out,), jnp.float32, -bound, bound)
    return w, b


def reference_forward(x, params, mxu_dtype=jnp.float32):
    """Plain-JAX reference of the PyTorch forward (optionally mirroring the
    kernel's bf16-operand / f32-accumulation strategy)."""
    w1, b1, w2, b2, w3, b3 = params
    h1 = jnp.maximum(
        jnp.dot(x.astype(mxu_dtype), w1.astype(mxu_dtype).T,
                preferred_element_type=jnp.float32) + b1, 0.0)
    h2 = jnp.maximum(
        jnp.dot(h1.astype(mxu_dtype), w2.astype(mxu_dtype).T,
                preferred_element_type=jnp.float32) + b2, 0.0)
    logit = jnp.dot(h2, w3.T, preferred_element_type=jnp.float32) + b3
    return jax.nn.sigmoid(logit)


if __name__ == "__main__":
    D, H1, H2 = 16, 32, 64

    key = jax.random.PRNGKey(0)
    k1, k2, k3, kx1, kx2 = jax.random.split(key, 5)

    w1, b1 = init_linear(k1, D, H1)
    w2, b2 = init_linear(k2, H1, H2)
    w3, b3 = init_linear(k3, H2, 1)
    params = (w1, b1, w2, b2, w3, b3)

    # Case 1: batch not a multiple of the tile -> exercises the over-covering
    # last block (in-kernel row mask) and a 2-step parallel grid.
    B = 1000
    x = jax.random.normal(kx1, (B, D), jnp.float32)
    out = jax.block_until_ready(mlp_forward(x, params))
    assert out.shape == (B, 1)
    assert bool(jnp.all(jnp.isfinite(out)))

    ref_matched = reference_forward(x, params, mxu_dtype=jnp.bfloat16)
    ref_f32 = reference_forward(x, params, mxu_dtype=jnp.float32)
    assert jnp.allclose(out, ref_matched, atol=5e-3, rtol=5e-3), \
        "mismatch vs bf16-matched reference"
    assert jnp.allclose(out, ref_f32, atol=3e-2, rtol=3e-2), \
        "mismatch vs f32 reference"

    # Case 2: tiny batch (single block covering the whole batch, one grid step).
    B2 = 8
    x2 = jax.random.normal(kx2, (B2, D), jnp.float32)
    out2 = jax.block_until_ready(mlp_forward(x2, params))
    assert out2.shape == (B2, 1)
    ref2 = reference_forward(x2, params, mxu_dtype=jnp.bfloat16)
    assert jnp.allclose(out2, ref2, atol=5e-3, rtol=5e-3), \
        "mismatch vs reference (small batch)"

    print("KERNEL_OK")
</pallas_src>

<mosaic_0001>
module attributes {stable_mosaic.version = 11 : i64} {
  func.func @mlp_kernel(%arg0: i32, %arg1: memref<512x16xf32, #tpu.memory_space<vmem>>, %arg2: memref<32x16xbf16, #tpu.memory_space<vmem>>, %arg3: memref<32x1xf32, #tpu.memory_space<vmem>>, %arg4: memref<64x32xbf16, #tpu.memory_space<vmem>>, %arg5: memref<64x1xf32, #tpu.memory_space<vmem>>, %arg6: memref<1x64xf32, #tpu.memory_space<vmem>>, %arg7: memref<1x1xf32, #tpu.memory_space<vmem>>, %arg8: memref<1x512xf32, #tpu.memory_space<vmem>>) attributes {dimension_semantics = [#tpu.dimension_semantics<parallel>], iteration_bounds = array<i64: 2>, scalar_prefetch = 0 : i64, scratch_operands = 0 : i64, tpu.core_type = #tpu.core_type<tc>, window_params = [{transform_indices = @transform_0, window_bounds = array<i64: 512, 16>}, {pipeline_mode = #tpu.pipeline_mode<synchronous>, transform_indices = @transform_1, window_bounds = array<i64: 32, 16>}, {pipeline_mode = #tpu.pipeline_mode<synchronous>, transform_indices = @transform_2, window_bounds = array<i64: 32, 1>}, {pipeline_mode = #tpu.pipeline_mode<synchronous>, transform_indices = @transform_3, window_bounds = array<i64: 64, 32>}, {pipeline_mode = #tpu.pipeline_mode<synchronous>, transform_indices = @transform_4, window_bounds = array<i64: 64, 1>}, {pipeline_mode = #tpu.pipeline_mode<synchronous>, transform_indices = @transform_5, window_bounds = array<i64: 1, 64>}, {pipeline_mode = #tpu.pipeline_mode<synchronous>, transform_indices = @transform_6, window_bounds = array<i64: 1, 1>}, {transform_indices = @transform_7, window_bounds = array<i64: 1, 512>}]} {
    %c0 = arith.constant 0 : index
    %c0_0 = arith.constant 0 : index
    %0 = vector.load %arg1[%c0, %c0_0] : memref<512x16xf32, #tpu.memory_space<vmem>>, vector<512x16xf32>
    %1 = tpu.iota {dimensions = array<i32: 0>} : vector<512x16xi32>
    %c512_i32 = arith.constant 512 : i32
    %2 = arith.muli %arg0, %c512_i32 : i32
    %3 = vector.broadcast %2 : i32 to vector<512x16xi32>
    %4 = arith.addi %1, %3 : vector<512x16xi32>
    %c1000_i32 = arith.constant 1000 : i32
    %5 = vector.broadcast %c1000_i32 : i32 to vector<512x16xi32>
    %6 = arith.cmpi slt, %4, %5 : vector<512x16xi32>
    %cst = arith.constant 0.000000e+00 : f32
    %7 = vector.broadcast %cst : f32 to vector<512x16xf32>
    %8 = arith.select %6, %0, %7 : vector<512x16xi1>, vector<512x16xf32>
    %9 = arith.truncf %8 : vector<512x16xf32> to vector<512x16xbf16>
    %c0_1 = arith.constant 0 : index
    %c0_2 = arith.constant 0 : index
    %10 = vector.load %arg2[%c0_1, %c0_2] : memref<32x16xbf16, #tpu.memory_space<vmem>>, vector<32x16xbf16>
    %cst_3 = arith.constant dense<0.000000e+00> : vector<32x512xf32>
    %11 = tpu.matmul %10, %9, %cst_3 {dimension_numbers = #tpu.dot_dimension_numbers<[1], [1], [0], [0], [0, 0, 1, 0], [], []>} : vector<32x16xbf16>, vector<512x16xbf16>, vector<32x512xf32> -> vector<32x512xf32>
    %c0_4 = arith.constant 0 : index
    %c0_5 = arith.constant 0 : index
    %12 = vector.load %arg3[%c0_4, %c0_5] : memref<32x1xf32, #tpu.memory_space<vmem>>, vector<32x1xf32>
    %13 = vector.broadcast %12 : vector<32x1xf32> to vector<32x512xf32>
    %14 = arith.addf %11, %13 : vector<32x512xf32>
    %cst_6 = arith.constant 0.000000e+00 : f32
    %15 = vector.broadcast %cst_6 : f32 to vector<32x512xf32>
    %16 = arith.maximumf %14, %15 : vector<32x512xf32>
    %c0_7 = arith.constant 0 : index
    %c0_8 = arith.constant 0 : index
    %17 = vector.load %arg4[%c0_7, %c0_8] : memref<64x32xbf16, #tpu.memory_space<vmem>>, vector<64x32xbf16>
    %18 = arith.truncf %16 : vector<32x512xf32> to vector<32x512xbf16>
    %cst_9 = arith.constant dense<0.000000e+00> : vector<64x512xf32>
    %19 = tpu.matmul %17, %18, %cst_9 {dimension_numbers = #tpu.dot_dimension_numbers<[1], [0], [0], [1], [0, 0, 1, 1], [], []>} : vector<64x32xbf16>, vector<32x512xbf16>, vector<64x512xf32> -> vector<64x512xf32>
    %c0_10 = arith.constant 0 : index
    %c0_11 = arith.constant 0 : index
    %20 = vector.load %arg5[%c0_10, %c0_11] : memref<64x1xf32, #tpu.memory_space<vmem>>, vector<64x1xf32>
    %21 = vector.broadcast %20 : vector<64x1xf32> to vector<64x512xf32>
    %22 = arith.addf %19, %21 : vector<64x512xf32>
    %cst_12 = arith.constant 0.000000e+00 : f32
    %23 = vector.broadcast %cst_12 : f32 to vector<64x512xf32>
    %24 = arith.maximumf %22, %23 : vector<64x512xf32>
    %c0_13 = arith.constant 0 : index
    %c0_14 = arith.constant 0 : index
    %25 = vector.load %arg6[%c0_13, %c0_14] : memref<1x64xf32, #tpu.memory_space<vmem>>, vector<1x64xf32>
    %cst_15 = arith.constant dense<0.000000e+00> : vector<1x512xf32>
    %26 = tpu.matmul %25, %24, %cst_15 {dimension_numbers = #tpu.dot_dimension_numbers<[1], [0], [0], [1], [0, 0, 1, 1], [], []>} : vector<1x64xf32>, vector<64x512xf32>, vector<1x512xf32> -> vector<1x512xf32>
    %c0_16 = arith.constant 0 : index
    %c0_17 = arith.constant 0 : index
    %27 = vector.load %arg7[%c0_16, %c0_17] : memref<1x1xf32, #tpu.memory_space<vmem>>, vector<1x1xf32>
    %28 = vector.broadcast %27 : vector<1x1xf32> to vector<1x512xf32>
    %29 = arith.addf %26, %28 : vector<1x512xf32>
    %30 = arith.negf %29 : vector<1x512xf32>
    %31 = math.exp %30 : vector<1x512xf32>
    %cst_18 = arith.constant 1.000000e+00 : f32
    %32 = vector.broadcast %cst_18 : f32 to vector<1x512xf32>
    %33 = arith.addf %32, %31 : vector<1x512xf32>
    %34 = arith.divf %32, %33 : vector<1x512xf32>
    %c0_19 = arith.constant 0 : index
    %c0_20 = arith.constant 0 : index
    %35 = vector.load %arg8[%c0_19, %c0_20] : memref<1x512xf32, #tpu.memory_space<vmem>>, vector<1x512xf32>
    tpu.vector_store %arg8[%c0_19, %c0_20], %34 {strides = array<i32>} : memref<1x512xf32, #tpu.memory_space<vmem>>, vector<1x512xf32>,
    return
  }
  func.func @transform_0(%arg0: i32) -> (i32, i32) {
    %c0_i32 = arith.constant 0 : i32
    %c0_i32_0 = arith.constant 0 : i32
    return %arg0, %c0_i32 : i32, i32
  }
  func.func @transform_1(%arg0: i32) -> (i32, i32) {
    %c0_i32 = arith.constant 0 : i32
    %c0_i32_0 = arith.constant 0 : i32
    %c0_i32_1 = arith.constant 0 : i32
    return %c0_i32, %c0_i32_0 : i32, i32
  }
  func.func @transform_2(%arg0: i32) -> (i32, i32) {
    %c0_i32 = arith.constant 0 : i32
    %c0_i32_0 = arith.constant 0 : i32
    %c0_i32_1 = arith.constant 0 : i32
    return %c0_i32, %c0_i32_0 : i32, i32
  }
  func.func @transform_3(%arg0: i32) -> (i32, i32) {
    %c0_i32 = arith.constant 0 : i32
    %c0_i32_0 = arith.constant 0 : i32
    %c0_i32_1 = arith.constant 0 : i32
    return %c0_i32, %c0_i32_0 : i32, i32
  }
  func.func @transform_4(%arg0: i32) -> (i32, i32) {
    %c0_i32 = arith.constant 0 : i32
    %c0_i32_0 = arith.constant 0 : i32
    %c0_i32_1 = arith.constant 0 : i32
    return %c0_i32, %c0_i32_0 : i32, i32
  }
  func.func @transform_5(%arg0: i32) -> (i32, i32) {
    %c0_i32 = arith.constant 0 : i32
    %c0_i32_0 = arith.constant 0 : i32
    %c0_i32_1 = arith.constant 0 : i32
    return %c0_i32, %c0_i32_0 : i32, i32
  }
  func.func @transform_6(%arg0: i32) -> (i32, i32) {
    %c0_i32 = arith.constant 0 : i32
    %c0_i32_0 = arith.constant 0 : i32
    %c0_i32_1 = arith.constant 0 : i32
    return %c0_i32, %c0_i32_0 : i32, i32
  }
  func.func @transform_7(%arg0: i32) -> (i32, i32) {
    %c0_i32 = arith.constant 0 : i32
    %c0_i32_0 = arith.constant 0 : i32
    return %c0_i32, %arg0 : i32, i32
  }
}

</mosaic_0001>

<llo_original>
// kernel: tpu_custom_call.1
$region0: #{tpu_custom_call.1}
  #allocation0 [shape = 'u32[]', space=smem, size = 0x4, offset = 0x4, fixed_abs, tag = 'smem constant byte address 0x4 - core index']
  #allocation1 [shape = 'u32[144,128]{1,0:T(1,128)}', space=vmem, size = 0x12000, scoped, tag = 'internal scratch']
  #allocation2 [shape = 'f32[1,1]{1,0:T(1,128)S(1)}', space=vmem, size = 0x200, scoped, tag = 'scoped memory for tpu_custom_call.1']
  %s0 = inlined_call_operand.vmem [shape: f32[1000,16], index: 0, kind: input, shape index: {}]
  %s1 = inlined_call_operand.vmem [shape: bf16[32,16], index: 1, kind: input, shape index: {}]
  %s2 = inlined_call_operand.vmem [shape: f32[32,1], index: 2, kind: input, shape index: {}]
  %s3 = inlined_call_operand.vmem [shape: bf16[64,32], index: 3, kind: input, shape index: {}]
  %s4 = inlined_call_operand.vmem [shape: f32[64,1], index: 4, kind: input, shape index: {}]
  %s5 = inlined_call_operand.vmem [shape: f32[1,64], index: 5, kind: input, shape index: {}]
  %s6 = inlined_call_operand.<no memory space> [shape: f32[1,1], index: 6, kind: input, shape index: {}]
  %s7 = inlined_call_operand.hbm [shape: f32[1,1000], index: 7, kind: output, shape index: {}]
  %s8 = sld [smem:[#allocation0]]
  $region61: #{tpu_custom_call.1} parent=0
    _
  %s10 = ssub.s32 1, %s8
  %s11 = scalar_select 0, %s10, %s8
  %v12 = vstv %s6
  %13 = vst [vmem:[#allocation2] sm:$0x1] %v12
  $region1: #{tpu_custom_call.1} parent=0
    #allocation3 [shape = 'u8[4096]{0}', space=vmem, size = 0x1000, scoped, tag = 'output window, operand 0']
    #allocation4 [shape = 's32[2]{0}', space=sflag, size = 0x8, scoped, tag = 'scoped memory for tpu_custom_call.1']
    %14 = vsyncpa [#allocation4], 0
    %s15 = scalar_lea.sflag [#allocation4], 1
    %16 = vsyncpa %s15, 0
    loop: start=0, step=1, limit=4
    $region2: #{tpu_custom_call.1} parent=1 // loop_pre_header
      _
    $region3: #{tpu_custom_call.1} parent=1 // loop_header
      %s18 = sphi 0, %s22
      %p19 = scmp.ge.s32.totalorder %s18, 4
      %s28 = sphi 0, %s30
      %s31 = sphi 0, %s28
      %s32 = sphi 0, %s31
      %s48 = sphi 0, %s32
      %s52 = sphi 0, %s52
      %s54 = sphi 0, %s52
      %s55 = sphi 0, %s54
      %s69 = sphi 0, %s55
      %s73 = sphi 0, %s73
      %s75 = sphi 0, %s73
      %s76 = sphi 0, %s75
      %s90 = sphi 0, %s76
      %s94 = sphi 0, %s94
      %s96 = sphi 0, %s94
      %s97 = sphi 0, %s96
      %s111 = sphi 0, %s97
      %s115 = sphi 0, %s115
      %s117 = sphi 0, %s115
      %s118 = sphi 0, %s117
      %s132 = sphi 0, %s118
      %s136 = sphi 0, %s136
      %s138 = sphi 0, %s136
      %s139 = sphi 0, %s138
      %s153 = sphi 0, %s139
      %s157 = sphi 0, %s157
      %s159 = sphi 0, %s157
      %s160 = sphi 0, %s159
      %s174 = sphi 0, %s160
      %s180 = sphi 0, %s182
      %s183 = sphi 0, %s180
      %s184 = sphi 0, %s183
      %s200 = sphi 0, %s184
    $region4: #{tpu_custom_call.1} parent=1 // loop_header_branch
      %21 = sbr.rel (%p19) target = $region8
    $region5: #{tpu_custom_call.1} parent=1 // loop_body
      %s23 = ssub.s32 %s18, 1
      %s24 = ssub.s32 %s18, 2
      %s25 = sadd.s32 %s18, 1
      %s26 = ssub.s32 %s18, %s25
      %p27 = scmp.eq.s32.totalorder %s26, 0
      %s29 = sadd.s32 %s28, 1
      %s30 = scalar_select %p27, %s28, %s29
      %p33 = pneg %p27
      %p34 = scmp.eq.s32.totalorder %s18, 1
      %p35 = por %p33, %p34
      %p36 = scmp.ne.s32.totalorder %s28, %s31
      %p37 = scmp.eq.s32.totalorder %s18, 0
      %p38 = por %p36, %p37
      %p39 = scmp.ne.s32.totalorder %s28, %s31
      %p40 = scmp.eq.s32.totalorder %s23, 1
      %p41 = por %p39, %p40
      %p42 = scmp.ne.s32.totalorder %s31, %s32
      %p43 = scmp.eq.s32.totalorder %s23, 0
      %p44 = por %p42, %p43
      %p45 = scmp.ne.s32.totalorder %s31, %s32
      %p46 = scmp.eq.s32.totalorder %s24, 1
      %p47 = por %p45, %p46
      %p49 = scmp.ne.s32.totalorder %s32, %s48
      %p50 = scmp.eq.s32.totalorder %s24, 0
      %p51 = por %p49, %p50
      %s53 = sadd.s32 %s52, 1
      %p56 = scmp.eq.s32.totalorder %s18, 1
      %p57 = scmp.ne.s32.totalorder %s52, %s54
      %p58 = scmp.eq.s32.totalorder %s18, 0
      %p59 = por %p57, %p58
      %p60 = scmp.ne.s32.totalorder %s52, %s54
      %p61 = scmp.eq.s32.totalorder %s23, 1
      %p62 = por %p60, %p61
      %p63 = scmp.ne.s32.totalorder %s54, %s55
      %p64 = scmp.eq.s32.totalorder %s23, 0
      %p65 = por %p63, %p64
      %p66 = scmp.ne.s32.totalorder %s54, %s55
      %p67 = scmp.eq.s32.totalorder %s24, 1
      %p68 = por %p66, %p67
      %p70 = scmp.ne.s32.totalorder %s55, %s69
      %p71 = scmp.eq.s32.totalorder %s24, 0
      %p72 = por %p70, %p71
      %s74 = sadd.s32 %s73, 1
      %p77 = scmp.eq.s32.totalorder %s18, 1
      %p78 = scmp.ne.s32.totalorder %s73, %s75
      %p79 = scmp.eq.s32.totalorder %s18, 0
      %p80 = por %p78, %p79
      %p81 = scmp.ne.s32.totalorder %s73, %s75
      %p82 = scmp.eq.s32.totalorder %s23, 1
      %p83 = por %p81, %p82
      %p84 = scmp.ne.s32.totalorder %s75, %s76
      %p85 = scmp.eq.s32.totalorder %s23, 0
      %p86 = por %p84, %p85
      %p87 = scmp.ne.s32.totalorder %s75, %s76
      %p88 = scmp.eq.s32.totalorder %s24, 1
      %p89 = por %p87, %p88
      %p91 = scmp.ne.s32.totalorder %s76, %s90
      %p92 = scmp.eq.s32.totalorder %s24, 0
      %p93 = por %p91, %p92
      %s95 = sadd.s32 %s94, 1
      %p98 = scmp.eq.s32.totalorder %s18, 1
      %p99 = scmp.ne.s32.totalorder %s94, %s96
      %p100 = scmp.eq.s32.totalorder %s18, 0
      %p101 = por %p99, %p100
      %p102 = scmp.ne.s32.totalorder %s94, %s96
      %p103 = scmp.eq.s32.totalorder %s23, 1
      %p104 = por %p102, %p103
      %p105 = scmp.ne.s32.totalorder %s96, %s97
      %p106 = scmp.eq.s32.totalorder %s23, 0
      %p107 = por %p105, %p106
      %p108 = scmp.ne.s32.totalorder %s96, %s97
      %p109 = scmp.eq.s32.totalorder %s24, 1
      %p110 = por %p108, %p109
      %p112 = scmp.ne.s32.totalorder %s97, %s111
      %p113 = scmp.eq.s32.totalorder %s24, 0
      %p114 = por %p112, %p113
      %s116 = sadd.s32 %s115, 1
      %p119 = scmp.eq.s32.totalorder %s18, 1
      %p120 = scmp.ne.s32.totalorder %s115, %s117
      %p121 = scmp.eq.s32.totalorder %s18, 0
      %p122 = por %p120, %p121
      %p123 = scmp.ne.s32.totalorder %s115, %s117
      %p124 = scmp.eq.s32.totalorder %s23, 1
      %p125 = por %p123, %p124
      %p126 = scmp.ne.s32.totalorder %s117, %s118
      %p127 = scmp.eq.s32.totalorder %s23, 0
      %p128 = por %p126, %p127
      %p129 = scmp.ne.s32.totalorder %s117, %s118
      %p130 = scmp.eq.s32.totalorder %s24, 1
      %p131 = por %p129, %p130
      %p133 = scmp.ne.s32.totalorder %s118, %s132
      %p134 = scmp.eq.s32.totalorder %s24, 0
      %p135 = por %p133, %p134
      %s137 = sadd.s32 %s136, 1
      %p140 = scmp.eq.s32.totalorder %s18, 1
      %p141 = scmp.ne.s32.totalorder %s136, %s138
      %p142 = scmp.eq.s32.totalorder %s18, 0
      %p143 = por %p141, %p142
      %p144 = scmp.ne.s32.totalorder %s136, %s138
      %p145 = scmp.eq.s32.totalorder %s23, 1
      %p146 = por %p144, %p145
      %p147 = scmp.ne.s32.totalorder %s138, %s139
      %p148 = scmp.eq.s32.totalorder %s23, 0
      %p149 = por %p147, %p148
      %p150 = scmp.ne.s32.totalorder %s138, %s139
      %p151 = scmp.eq.s32.totalorder %s24, 1
      %p152 = por %p150, %p151
      %p154 = scmp.ne.s32.totalorder %s139, %s153
      %p155 = scmp.eq.s32.totalorder %s24, 0
      %p156 = por %p154, %p155
      %s158 = sadd.s32 %s157, 1
      %p161 = scmp.eq.s32.totalorder %s18, 1
      %p162 = scmp.ne.s32.totalorder %s157, %s159
      %p163 = scmp.eq.s32.totalorder %s18, 0
      %p164 = por %p162, %p163
      %p165 = scmp.ne.s32.totalorder %s157, %s159
      %p166 = scmp.eq.s32.totalorder %s23, 1
      %p167 = por %p165, %p166
      %p168 = scmp.ne.s32.totalorder %s159, %s160
      %p169 = scmp.eq.s32.totalorder %s23, 0
      %p170 = por %p168, %p169
      %p171 = scmp.ne.s32.totalorder %s159, %s160
      %p172 = scmp.eq.s32.totalorder %s24, 1
      %p173 = por %p171, %p172
      %p175 = scmp.ne.s32.totalorder %s160, %s174
      %p176 = scmp.eq.s32.totalorder %s24, 0
      %p177 = por %p175, %p176
      %s178 = ssub.s32 %s18, %s25
      %p179 = scmp.eq.s32.totalorder %s178, 0
      %s181 = sadd.s32 %s180, 1
      %s182 = scalar_select %p179, %s180, %s181
      %p185 = pneg %p179
      %p186 = scmp.eq.s32.totalorder %s18, 1
      %p187 = por %p185, %p186
      %p188 = scmp.ne.s32.totalorder %s180, %s183
      %p189 = scmp.eq.s32.totalorder %s18, 0
      %p190 = por %p188, %p189
      %p191 = scmp.ne.s32.totalorder %s180, %s183
      %p192 = scmp.eq.s32.totalorder %s23, 1
      %p193 = por %p191, %p192
      %p194 = scmp.ne.s32.totalorder %s183, %s184
      %p195 = scmp.eq.s32.totalorder %s23, 0
      %p196 = por %p194, %p195
      %p197 = scmp.ne.s32.totalorder %s183, %s184
      %p198 = scmp.eq.s32.totalorder %s24, 1
      %p199 = por %p197, %p198
      %p201 = scmp.ne.s32.totalorder %s184, %s200
      %p202 = scmp.eq.s32.totalorder %s24, 0
      %p203 = por %p201, %p202
      %p204 = scmp.le.s32.totalorder 1, %s18
      %p205 = scmp.lt.s32.totalorder %s18, 3
      %p206 = pnand %p204, %p205
      %p207 = pneg %p206
      // Predicated region
      $region9: #{tpu_custom_call.1} parent=5 // pred_check
        _
      $region10: #{tpu_custom_call.1} parent=5 // pred_check_branch
        %209 = sbr.rel (%p206) target = $region12
      $region11: #{tpu_custom_call.1} parent=5 // pred_region
        %s210 = ssub.s32 %s18, 1
        // Predicated region
        $region13: #{tpu_custom_call.1} parent=11 // pred_check
          %p211 = pneg %p65
        $region14: #{tpu_custom_call.1} parent=11 // pred_check_branch
          %213 = sbr.rel (%p211) target = $region16
        $region15: #{tpu_custom_call.1} parent=11 // pred_region
          _
        $region16: #{tpu_custom_call.1} parent=11 // pred_fallthru
          _
        // Predicated region
        $region17: #{tpu_custom_call.1} parent=11 // pred_check
          %p214 = pneg %p86
        $region18: #{tpu_custom_call.1} parent=11 // pred_check_branch
          %216 = sbr.rel (%p214) target = $region20
        $region19: #{tpu_custom_call.1} parent=11 // pred_region
          _
        $region20: #{tpu_custom_call.1} parent=11 // pred_fallthru
          _
        // Predicated region
        $region21: #{tpu_custom_call.1} parent=11 // pred_check
          %p217 = pneg %p107
        $region22: #{tpu_custom_call.1} parent=11 // pred_check_branch
          %219 = sbr.rel (%p217) target = $region24
        $region23: #{tpu_custom_call.1} parent=11 // pred_region
          _
        $region24: #{tpu_custom_call.1} parent=11 // pred_fallthru
          _
        // Predicated region
        $region25: #{tpu_custom_call.1} parent=11 // pred_check
          %p220 = pneg %p128
        $region26: #{tpu_custom_call.1} parent=11 // pred_check_branch
          %222 = sbr.rel (%p220) target = $region28
        $region27: #{tpu_custom_call.1} parent=11 // pred_region
          _
        $region28: #{tpu_custom_call.1} parent=11 // pred_fallthru
          _
        // Predicated region
        $region29: #{tpu_custom_call.1} parent=11 // pred_check
          %p223 = pneg %p149
        $region30: #{tpu_custom_call.1} parent=11 // pred_check_branch
          %225 = sbr.rel (%p223) target = $region32
        $region31: #{tpu_custom_call.1} parent=11 // pred_region
          _
        $region32: #{tpu_custom_call.1} parent=11 // pred_fallthru
          _
        // Predicated region
        $region33: #{tpu_custom_call.1} parent=11 // pred_check
          %p226 = pneg %p170
        $region34: #{tpu_custom_call.1} parent=11 // pred_check_branch
          %228 = sbr.rel (%p226) target = $region36
        $region35: #{tpu_custom_call.1} parent=11 // pred_region
          _
        $region36: #{tpu_custom_call.1} parent=11 // pred_fallthru
          _
      $region12: #{tpu_custom_call.1} parent=5 // pred_fallthru
        _
      %p229 = scmp.lt.s32.totalorder %s18, 2
      // Predicated region
      $region37: #{tpu_custom_call.1} parent=5 // pred_check
        %p230 = pneg %p229
      $region38: #{tpu_custom_call.1} parent=5 // pred_check_branch
        %232 = sbr.rel (%p230) target = $region40
      $region39: #{tpu_custom_call.1} parent=5 // pred_region
        // Predicated region
        $region41: #{tpu_custom_call.1} parent=39 // pred_check
          %p233 = pneg %p38
        $region42: #{tpu_custom_call.1} parent=39 // pred_check_branch
          %235 = sbr.rel (%p233) target = $region44
        $region43: #{tpu_custom_call.1} parent=39 // pred_region
          %s236 = smul.u32 64, %s18
          %s237 = ssub.s32 125, %s236
          %p238 = scmp.lt.s32.totalorder %s237, 64
          %s239 = scalar_select %p238, %s237, 64
          %s240 = smul.u32 128, %s239
          %p241 = scmp.lt.s32.totalorder %s236, 124
          %s242 = scalar_select %p241, %s236, 124
          %s243 = smul.addr %s242, 8
          %s244 = scalar_lea.vmem %s0, %s243
          %s245 = smul.u32 64, %s18
          %s246 = ssub.s32 125, %s245
          %p247 = scmp.lt.s32.totalorder %s246, 64
          %s248 = scalar_select %p247, %s246, 64
          %s249 = smul.u32 128, %s248
        $region44: #{tpu_custom_call.1} parent=39 // pred_fallthru
          _
      $region40: #{tpu_custom_call.1} parent=5 // pred_fallthru
        _
      %p250 = scmp.le.s32.totalorder 1, %s18
      %p251 = scmp.lt.s32.totalorder %s18, 3
      %p252 = pnand %p250, %p251
      %p253 = pneg %p252
      // Predicated region
      $region45: #{tpu_custom_call.1} parent=5 // pred_check
        _
      $region46: #{tpu_custom_call.1} parent=5 // pred_check_branch
        %255 = sbr.rel (%p252) target = $region48
      $region47: #{tpu_custom_call.1} parent=5 // pred_region
        %s256 = ssub.s32 %s18, 1
        %s257 = smul.u32 64, %s23
        %s258 = ssub.s32 125, %s257
        %p259 = scmp.lt.s32.totalorder %s258, 64
        %s260 = scalar_select %p259, %s258, 64
        %s261 = smul.u32 128, %s260
        %p262 = scmp.lt.s32.totalorder %s257, 124
        %s263 = scalar_select %p262, %s257, 124
        %s264 = smul.addr %s263, 8
        %s265 = scalar_lea.vmem %s0, %s264
        %p266 = pneg %p44
        %p267 = pneg %p41
        %p268 = pneg %p65
        %p269 = pneg %p62
        %p270 = pneg %p86
        %p271 = pneg %p83
        %p272 = pneg %p107
        %p273 = pneg %p104
        %p274 = pneg %p128
        %p275 = pneg %p125
        %p276 = pneg %p149
        %p277 = pneg %p146
        %p278 = pneg %p170
        %p279 = pneg %p167
        %p280 = pneg %p196
        %p281 = pneg %p193
        %s282 = sand.u32 %s183, 1
        %s283 = scalar_lea.sflag [#allocation4], %s282
        %s284 = sand.u32 %s183, 1
        %s285 = smul.addr %s284, 4
        %s286 = scalar_lea.vmem [#allocation3], %s285
        %s287 = smul.u32 64, %s23
        %s288 = ssub.s32 125, %s287
        %p289 = scmp.lt.s32.totalorder %s288, 64
        %s290 = scalar_select %p289, %s288, 64
        %s291 = smul.u32 128, %s290
        %p292 = scmp.lt.s32.totalorder %s287, 124
        %s293 = scalar_select %p292, %s287, 124
        %s294 = smul.addr %s293, 8
        %s295 = scalar_lea.vmem %s0, %s294
        %s296 = smul.u32 64, %s23
        %s297 = ssub.s32 125, %s296
        %p298 = scmp.lt.s32.totalorder %s297, 64
        %s299 = scalar_select %p298, %s297, 64
        %s300 = smul.u32 128, %s299
        %s301 = smul.u32 4, %s23
        %v303 = vld [vmem:[%s295] sm:$0xff]
        %v304 = vld [vmem:[%s295 + $0x8] sm:$0xff]
        %v305 = vld [vmem:[%s295 + $0x10] sm:$0xff]
        %v306 = vld [vmem:[%s295 + $0x18] sm:$0xff]
        %v307 = vld [vmem:[%s295 + $0x20] sm:$0xff]
        %v308 = vld [vmem:[%s295 + $0x28] sm:$0xff]
        %v309 = vld [vmem:[%s295 + $0x30] sm:$0xff]
        %v310 = vld [vmem:[%s295 + $0x38] sm:$0xff]
        %v311 = vld [vmem:[%s295 + $0x40] sm:$0xff]
        %v312 = vld [vmem:[%s295 + $0x48] sm:$0xff]
        %v313 = vld [vmem:[%s295 + $0x50] sm:$0xff]
        %v314 = vld [vmem:[%s295 + $0x58] sm:$0xff]
        %v315 = vld [vmem:[%s295 + $0x60] sm:$0xff]
        %v316 = vld [vmem:[%s295 + $0x68] sm:$0xff]
        %v317 = vld [vmem:[%s295 + $0x70] sm:$0xff]
        %v318 = vld [vmem:[%s295 + $0x78] sm:$0xff]
        %v319 = vld [vmem:[%s295 + $0x80] sm:$0xff]
        %v320 = vld [vmem:[%s295 + $0x88] sm:$0xff]
        %v321 = vld [vmem:[%s295 + $0x90] sm:$0xff]
        %v322 = vld [vmem:[%s295 + $0x98] sm:$0xff]
        %v323 = vld [vmem:[%s295 + $0xa0] sm:$0xff]
        %v324 = vld [vmem:[%s295 + $0xa8] sm:$0xff]
        %v325 = vld [vmem:[%s295 + $0xb0] sm:$0xff]
        %v326 = vld [vmem:[%s295 + $0xb8] sm:$0xff]
        %v327 = vld [vmem:[%s295 + $0xc0] sm:$0xff]
        %v328 = vld [vmem:[%s295 + $0xc8] sm:$0xff]
        %v329 = vld [vmem:[%s295 + $0xd0] sm:$0xff]
        %v330 = vld [vmem:[%s295 + $0xd8] sm:$0xff]
        %v331 = vld [vmem:[%s295 + $0xe0] sm:$0xff]
        %v332 = vld [vmem:[%s295 + $0xe8] sm:$0xff]
        %v333 = vld [vmem:[%s295 + $0xf0] sm:$0xff]
        %v334 = vld [vmem:[%s295 + $0xf8] sm:$0xff]
        %v335 = vld [vmem:[%s295 + $0x100] sm:$0xff]
        %v336 = vld [vmem:[%s295 + $0x108] sm:$0xff]
        %v337 = vld [vmem:[%s295 + $0x110] sm:$0xff]
        %v338 = vld [vmem:[%s295 + $0x118] sm:$0xff]
        %v339 = vld [vmem:[%s295 + $0x120] sm:$0xff]
        %v340 = vld [vmem:[%s295 + $0x128] sm:$0xff]
        %v341 = vld [vmem:[%s295 + $0x130] sm:$0xff]
        %v342 = vld [vmem:[%s295 + $0x138] sm:$0xff]
        %v343 = vld [vmem:[%s295 + $0x140] sm:$0xff]
        %v344 = vld [vmem:[%s295 + $0x148] sm:$0xff]
        %v345 = vld [vmem:[%s295 + $0x150] sm:$0xff]
        %v346 = vld [vmem:[%s295 + $0x158] sm:$0xff]
        %v347 = vld [vmem:[%s295 + $0x160] sm:$0xff]
        %v348 = vld [vmem:[%s295 + $0x168] sm:$0xff]
        %v349 = vld [vmem:[%s295 + $0x170] sm:$0xff]
        %v350 = vld [vmem:[%s295 + $0x178] sm:$0xff]
        %v351 = vld [vmem:[%s295 + $0x180] sm:$0xff]
        %v352 = vld [vmem:[%s295 + $0x188] sm:$0xff]
        %v353 = vld [vmem:[%s295 + $0x190] sm:$0xff]
        %v354 = vld [vmem:[%s295 + $0x198] sm:$0xff]
        %v355 = vld [vmem:[%s295 + $0x1a0] sm:$0xff]
        %v356 = vld [vmem:[%s295 + $0x1a8] sm:$0xff]
        %v357 = vld [vmem:[%s295 + $0x1b0] sm:$0xff]
        %v358 = vld [vmem:[%s295 + $0x1b8] sm:$0xff]
        %v359 = vld [vmem:[%s295 + $0x1c0] sm:$0xff]
        %v360 = vld [vmem:[%s295 + $0x1c8] sm:$0xff]
        %v361 = vld [vmem:[%s295 + $0x1d0] sm:$0xff]
        %v362 = vld [vmem:[%s295 + $0x1d8] sm:$0xff]
        %v363 = vld [vmem:[%s295 + $0x1e0] sm:$0xff]
        %v364 = vld [vmem:[%s295 + $0x1e8] sm:$0xff]
        %v365 = vld [vmem:[%s295 + $0x1f0] sm:$0xff]
        %v366 = vld [vmem:[%s295 + $0x1f8] sm:$0xff]
        %v367 = vlaneseq
        %v368 = vshrl.u32 %v367, 7
        %v369 = vadd.s32 %v368, 8
        %v370 = vadd.s32 %v368, 16
        %v371 = vadd.s32 %v368, 24
        %v372 = vadd.s32 %v368, 32
        %v373 = vadd.s32 %v368, 40
        %v374 = vadd.s32 %v368, 48
        %v375 = vadd.s32 %v368, 56
        %v376 = vadd.s32 %v368, 64
        %v377 = vadd.s32 %v368, 72
        %v378 = vadd.s32 %v368, 80
        %v379 = vadd.s32 %v368, 88
        %v380 = vadd.s32 %v368, 96
        %v381 = vadd.s32 %v368, 104
        %v382 = vadd.s32 %v368, 112
        %v383 = vadd.s32 %v368, 120
        %v384 = vadd.s32 %v368, 128
        %v385 = vadd.s32 %v368, 136
        %v386 = vadd.s32 %v368, 144
        %v387 = vadd.s32 %v368, 152
        %v388 = vadd.s32 %v368, 160
        %v389 = vadd.s32 %v368, 168
        %v390 = vadd.s32 %v368, 176
        %v391 = vadd.s32 %v368, 184
        %v392 = vadd.s32 %v368, 192
        %v393 = vadd.s32 %v368, 200
        %v394 = vadd.s32 %v368, 208
        %v395 = vadd.s32 %v368, 216
        %v396 = vadd.s32 %v368, 224
        %v397 = vadd.s32 %v368, 232
        %v398 = vadd.s32 %v368, 240
        %v399 = vadd.s32 %v368, 248
        %v400 = vadd.s32 %v368, 256
        %v401 = vadd.s32 %v368, 264
        %v402 = vadd.s32 %v368, 272
        %v403 = vadd.s32 %v368, 280
        %v404 = vadd.s32 %v368, 288
        %v405 = vadd.s32 %v368, 296
        %v406 = vadd.s32 %v368, 304
        %v407 = vadd.s32 %v368, 312
        %v408 = vadd.s32 %v368, 320
        %v409 = vadd.s32 %v368, 328
        %v410 = vadd.s32 %v368, 336
        %v411 = vadd.s32 %v368, 344
        %v412 = vadd.s32 %v368, 352
        %v413 = vadd.s32 %v368, 360
        %v414 = vadd.s32 %v368, 368
        %v415 = vadd.s32 %v368, 376
        %v416 = vadd.s32 %v368, 384
        %v417 = vadd.s32 %v368, 392
        %v418 = vadd.s32 %v368, 400
        %v419 = vadd.s32 %v368, 408
        %v420 = vadd.s32 %v368, 416
        %v421 = vadd.s32 %v368, 424
        %v422 = vadd.s32 %v368, 432
        %v423 = vadd.s32 %v368, 440
        %v424 = vadd.s32 %v368, 448
        %v425 = vadd.s32 %v368, 456
        %v426 = vadd.s32 %v368, 464
        %v427 = vadd.s32 %v368, 472
        %v428 = vadd.s32 %v368, 480
        %v429 = vadd.s32 %v368, 488
        %v430 = vadd.s32 %v368, 496
        %v431 = vadd.s32 %v368, 504
        %s432 = smul.u32 %s23, 512
        %v433 = vstv %s432
        %v434 = vadd.s32 %v368, %v433
        %v435 = vadd.s32 %v369, %v433
        %v436 = vadd.s32 %v370, %v433
        %v437 = vadd.s32 %v371, %v433
        %v438 = vadd.s32 %v372, %v433
        %v439 = vadd.s32 %v373, %v433
        %v440 = vadd.s32 %v374, %v433
        %v441 = vadd.s32 %v375, %v433
        %v442 = vadd.s32 %v376, %v433
        %v443 = vadd.s32 %v377, %v433
        %v444 = vadd.s32 %v378, %v433
        %v445 = vadd.s32 %v379, %v433
        %v446 = vadd.s32 %v380, %v433
        %v447 = vadd.s32 %v381, %v433
        %v448 = vadd.s32 %v382, %v433
        %v449 = vadd.s32 %v383, %v433
        %v450 = vadd.s32 %v384, %v433
        %v451 = vadd.s32 %v385, %v433
        %v452 = vadd.s32 %v386, %v433
        %v453 = vadd.s32 %v387, %v433
        %v454 = vadd.s32 %v388, %v433
        %v455 = vadd.s32 %v389, %v433
        %v456 = vadd.s32 %v390, %v433
        %v457 = vadd.s32 %v391, %v433
        %v458 = vadd.s32 %v392, %v433
        %v459 = vadd.s32 %v393, %v433
        %v460 = vadd.s32 %v394, %v433
        %v461 = vadd.s32 %v395, %v433
        %v462 = vadd.s32 %v396, %v433
        %v463 = vadd.s32 %v397, %v433
        %v464 = vadd.s32 %v398, %v433
        %v465 = vadd.s32 %v399, %v433
        %v466 = vadd.s32 %v400, %v433
        %v467 = vadd.s32 %v401, %v433
        %v468 = vadd.s32 %v402, %v433
        %v469 = vadd.s32 %v403, %v433
        %v470 = vadd.s32 %v404, %v433
        %v471 = vadd.s32 %v405, %v433
        %v472 = vadd.s32 %v406, %v433
        %v473 = vadd.s32 %v407, %v433
        %v474 = vadd.s32 %v408, %v433
        %v475 = vadd.s32 %v409, %v433
        %v476 = vadd.s32 %v410, %v433
        %v477 = vadd.s32 %v411, %v433
        %v478 = vadd.s32 %v412, %v433
        %v479 = vadd.s32 %v413, %v433
        %v480 = vadd.s32 %v414, %v433
        %v481 = vadd.s32 %v415, %v433
        %v482 = vadd.s32 %v416, %v433
        %v483 = vadd.s32 %v417, %v433
        %v484 = vadd.s32 %v418, %v433
        %v485 = vadd.s32 %v419, %v433
        %v486 = vadd.s32 %v420, %v433
        %v487 = vadd.s32 %v421, %v433
        %v488 = vadd.s32 %v422, %v433
        %v489 = vadd.s32 %v423, %v433
        %v490 = vadd.s32 %v424, %v433
        %v491 = vadd.s32 %v425, %v433
        %v492 = vadd.s32 %v426, %v433
        %v493 = vadd.s32 %v427, %v433
        %v494 = vadd.s32 %v428, %v433
        %v495 = vadd.s32 %v429, %v433
        %v496 = vadd.s32 %v430, %v433
        %v497 = vadd.s32 %v431, %v433
        %vm498 = vcmp.lt.s32.totalorder %v434, 1000
        %vm499 = vcmp.lt.s32.totalorder %v435, 1000
        %vm500 = vcmp.lt.s32.totalorder %v436, 1000
        %vm501 = vcmp.lt.s32.totalorder %v437, 1000
        %vm502 = vcmp.lt.s32.totalorder %v438, 1000
        %vm503 = vcmp.lt.s32.totalorder %v439, 1000
        %vm504 = vcmp.lt.s32.totalorder %v440, 1000
        %vm505 = vcmp.lt.s32.totalorder %v441, 1000
        %vm506 = vcmp.lt.s32.totalorder %v442, 1000
        %vm507 = vcmp.lt.s32.totalorder %v443, 1000
        %vm508 = vcmp.lt.s32.totalorder %v444, 1000
        %vm509 = vcmp.lt.s32.totalorder %v445, 1000
        %vm510 = vcmp.lt.s32.totalorder %v446, 1000
        %vm511 = vcmp.lt.s32.totalorder %v447, 1000
        %vm512 = vcmp.lt.s32.totalorder %v448, 1000
        %vm513 = vcmp.lt.s32.totalorder %v449, 1000
        %vm514 = vcmp.lt.s32.totalorder %v450, 1000
        %vm515 = vcmp.lt.s32.totalorder %v451, 1000
        %vm516 = vcmp.lt.s32.totalorder %v452, 1000
        %vm517 = vcmp.lt.s32.totalorder %v453, 1000
        %vm518 = vcmp.lt.s32.totalorder %v454, 1000
        %vm519 = vcmp.lt.s32.totalorder %v455, 1000
        %vm520 = vcmp.lt.s32.totalorder %v456, 1000
        %vm521 = vcmp.lt.s32.totalorder %v457, 1000
        %vm522 = vcmp.lt.s32.totalorder %v458, 1000
        %vm523 = vcmp.lt.s32.totalorder %v459, 1000
        %vm524 = vcmp.lt.s32.totalorder %v460, 1000
        %vm525 = vcmp.lt.s32.totalorder %v461, 1000
        %vm526 = vcmp.lt.s32.totalorder %v462, 1000
        %vm527 = vcmp.lt.s32.totalorder %v463, 1000
        %vm528 = vcmp.lt.s32.totalorder %v464, 1000
        %vm529 = vcmp.lt.s32.totalorder %v465, 1000
        %vm530 = vcmp.lt.s32.totalorder %v466, 1000
        %vm531 = vcmp.lt.s32.totalorder %v467, 1000
        %vm532 = vcmp.lt.s32.totalorder %v468, 1000
        %vm533 = vcmp.lt.s32.totalorder %v469, 1000
        %vm534 = vcmp.lt.s32.totalorder %v470, 1000
        %vm535 = vcmp.lt.s32.totalorder %v471, 1000
        %vm536 = vcmp.lt.s32.totalorder %v472, 1000
        %vm537 = vcmp.lt.s32.totalorder %v473, 1000
        %vm538 = vcmp.lt.s32.totalorder %v474, 1000
        %vm539 = vcmp.lt.s32.totalorder %v475, 1000
        %vm540 = vcmp.lt.s32.totalorder %v476, 1000
        %vm541 = vcmp.lt.s32.totalorder %v477, 1000
        %vm542 = vcmp.lt.s32.totalorder %v478, 1000
        %vm543 = vcmp.lt.s32.totalorder %v479, 1000
        %vm544 = vcmp.lt.s32.totalorder %v480, 1000
        %vm545 = vcmp.lt.s32.totalorder %v481, 1000
        %vm546 = vcmp.lt.s32.totalorder %v482, 1000
        %vm547 = vcmp.lt.s32.totalorder %v483, 1000
        %vm548 = vcmp.lt.s32.totalorder %v484, 1000
        %vm549 = vcmp.lt.s32.totalorder %v485, 1000
        %vm550 = vcmp.lt.s32.totalorder %v486, 1000
        %vm551 = vcmp.lt.s32.totalorder %v487, 1000
        %vm552 = vcmp.lt.s32.totalorder %v488, 1000
        %vm553 = vcmp.lt.s32.totalorder %v489, 1000
        %vm554 = vcmp.lt.s32.totalorder %v490, 1000
        %vm555 = vcmp.lt.s32.totalorder %v491, 1000
        %vm556 = vcmp.lt.s32.totalorder %v492, 1000
        %vm557 = vcmp.lt.s32.totalorder %v493, 1000
        %vm558 = vcmp.lt.s32.totalorder %v494, 1000
        %vm559 = vcmp.lt.s32.totalorder %v495, 1000
        %vm560 = vcmp.lt.s32.totalorder %v496, 1000
        %vm561 = vcmp.lt.s32.totalorder %v497, 1000
        %v562 = vsel %vm498, %v303, 0.0
        %v563 = vsel %vm499, %v304, 0.0
        %v564 = vsel %vm500, %v305, 0.0
        %v565 = vsel %vm501, %v306, 0.0
        %v566 = vsel %vm502, %v307, 0.0
        %v567 = vsel %vm503, %v308, 0.0
        %v568 = vsel %vm504, %v309, 0.0
        %v569 = vsel %vm505, %v310, 0.0
        %v570 = vsel %vm506, %v311, 0.0
        %v571 = vsel %vm507, %v312, 0.0
        %v572 = vsel %vm508, %v313, 0.0
        %v573 = vsel %vm509, %v314, 0.0
        %v574 = vsel %vm510, %v315, 0.0
        %v575 = vsel %vm511, %v316, 0.0
        %v576 = vsel %vm512, %v317, 0.0
        %v577 = vsel %vm513, %v318, 0.0
        %v578 = vsel %vm514, %v319, 0.0
        %v579 = vsel %vm515, %v320, 0.0
        %v580 = vsel %vm516, %v321, 0.0
        %v581 = vsel %vm517, %v322, 0.0
        %v582 = vsel %vm518, %v323, 0.0
        %v583 = vsel %vm519, %v324, 0.0
        %v584 = vsel %vm520, %v325, 0.0
        %v585 = vsel %vm521, %v326, 0.0
        %v586 = vsel %vm522, %v327, 0.0
        %v587 = vsel %vm523, %v328, 0.0
        %v588 = vsel %vm524, %v329, 0.0
        %v589 = vsel %vm525, %v330, 0.0
        %v590 = vsel %vm526, %v331, 0.0
        %v591 = vsel %vm527, %v332, 0.0
        %v592 = vsel %vm528, %v333, 0.0
        %v593 = vsel %vm529, %v334, 0.0
        %v594 = vsel %vm530, %v335, 0.0
        %v595 = vsel %vm531, %v336, 0.0
        %v596 = vsel %vm532, %v337, 0.0
        %v597 = vsel %vm533, %v338, 0.0
        %v598 = vsel %vm534, %v339, 0.0
        %v599 = vsel %vm535, %v340, 0.0
        %v600 = vsel %vm536, %v341, 0.0
        %v601 = vsel %vm537, %v342, 0.0
        %v602 = vsel %vm538, %v343, 0.0
        %v603 = vsel %vm539, %v344, 0.0
        %v604 = vsel %vm540, %v345, 0.0
        %v605 = vsel %vm541, %v346, 0.0
        %v606 = vsel %vm542, %v347, 0.0
        %v607 = vsel %vm543, %v348, 0.0
        %v608 = vsel %vm544, %v349, 0.0
        %v609 = vsel %vm545, %v350, 0.0
        %v610 = vsel %vm546, %v351, 0.0
        %v611 = vsel %vm547, %v352, 0.0
        %v612 = vsel %vm548, %v353, 0.0
        %v613 = vsel %vm549, %v354, 0.0
        %v614 = vsel %vm550, %v355, 0.0
        %v615 = vsel %vm551, %v356, 0.0
        %v616 = vsel %vm552, %v357, 0.0
        %v617 = vsel %vm553, %v358, 0.0
        %v618 = vsel %vm554, %v359, 0.0
        %v619 = vsel %vm555, %v360, 0.0
        %v620 = vsel %vm556, %v361, 0.0
        %v621 = vsel %vm557, %v362, 0.0
        %v622 = vsel %vm558, %v363, 0.0
        %v623 = vsel %vm559, %v364, 0.0
        %v624 = vsel %vm560, %v365, 0.0
        %v625 = vsel %vm561, %v366, 0.0
        %v626 = vpack.c.bf16 %v563, %v562
        %v627 = vpack.c.bf16 %v565, %v564
        %v628 = vpack.c.bf16 %v567, %v566
        %v629 = vpack.c.bf16 %v569, %v568
        %v630 = vpack.c.bf16 %v571, %v570
        %v631 = vpack.c.bf16 %v573, %v572
        %v632 = vpack.c.bf16 %v575, %v574
        %v633 = vpack.c.bf16 %v577, %v576
        %v634 = vpack.c.bf16 %v579, %v578
        %v635 = vpack.c.bf16 %v581, %v580
        %v636 = vpack.c.bf16 %v583, %v582
        %v637 = vpack.c.bf16 %v585, %v584
        %v638 = vpack.c.bf16 %v587, %v586
        %v639 = vpack.c.bf16 %v589, %v588
        %v640 = vpack.c.bf16 %v591, %v590
        %v641 = vpack.c.bf16 %v593, %v592
        %v642 = vpack.c.bf16 %v595, %v594
        %v643 = vpack.c.bf16 %v597, %v596
        %v644 = vpack.c.bf16 %v599, %v598
        %v645 = vpack.c.bf16 %v601, %v600
        %v646 = vpack.c.bf16 %v603, %v602
        %v647 = vpack.c.bf16 %v605, %v604
        %v648 = vpack.c.bf16 %v607, %v606
        %v649 = vpack.c.bf16 %v609, %v608
        %v650 = vpack.c.bf16 %v611, %v610
        %v651 = vpack.c.bf16 %v613, %v612
        %v652 = vpack.c.bf16 %v615, %v614
        %v653 = vpack.c.bf16 %v617, %v616
        %v654 = vpack.c.bf16 %v619, %v618
        %v655 = vpack.c.bf16 %v621, %v620
        %v656 = vpack.c.bf16 %v623, %v622
        %v657 = vpack.c.bf16 %v625, %v624
        %v658 = vld [vmem:[%s1] sm:$0xf]
        %v659 = vld [vmem:[%s1 + $0x4] sm:$0xf]
        %v660 = vld [vmem:[%s1 + $0x8] sm:$0xf]
        %v661 = vld [vmem:[%s1 + $0xc] sm:$0xf]
        %v662 = vld [vmem:[%s2] sm:$0xff]
        %v663 = vld [vmem:[%s2 + $0x8] sm:$0xff]
        %v664 = vld [vmem:[%s2 + $0x10] sm:$0xff]
        %v665 = vld [vmem:[%s2 + $0x18] sm:$0xff]
        %667 = vset.pattern.permute.xlu0 0
        %668 = vperm.xlu0 %667, %v662
        %v669 = vpop.permute.xlu0 %668
        %672 = vset.pattern.permute.xlu0 0
        %673 = vperm.xlu0 %672, %v663
        %v674 = vpop.permute.xlu0 %673
        %677 = vset.pattern.permute.xlu0 0
        %678 = vperm.xlu0 %677, %v664
        %v679 = vpop.permute.xlu0 %678
        %682 = vset.pattern.permute.xlu0 0
        %683 = vperm.xlu0 %682, %v665
        %v684 = vpop.permute.xlu0 %683
        %v690 = vunpack.c.l.b16 %v658
        %v691 = vunpack.c.l.b16 %v659
        %v692 = vunpack.c.l.b16 %v660
        %v693 = vunpack.c.l.b16 %v661
        %v694 = vpack.c.b16 %v691, %v690
        %v695 = vpack.c.b16 %v693, %v692
        %vm696 = vcmask 130048
        %v698 = vsel %vm696, %v694, 0
        %v701 = vsel %vm696, %v695, 0
        %v704 = vsel %vm696, %v626, 0
        %v707 = vsel %vm696, %v627, 0
        %v710 = vsel %vm696, %v628, 0
        %v713 = vsel %vm696, %v629, 0
        %v716 = vsel %vm696, %v630, 0
        %v719 = vsel %vm696, %v631, 0
        %v722 = vsel %vm696, %v632, 0
        %v725 = vsel %vm696, %v633, 0
        %v728 = vsel %vm696, %v634, 0
        %v731 = vsel %vm696, %v635, 0
        %v734 = vsel %vm696, %v636, 0
        %v737 = vsel %vm696, %v637, 0
        %v740 = vsel %vm696, %v638, 0
        %v743 = vsel %vm696, %v639, 0
        %v746 = vsel %vm696, %v640, 0
        %v749 = vsel %vm696, %v641, 0
        %v752 = vsel %vm696, %v642, 0
        %v755 = vsel %vm696, %v643, 0
        %v758 = vsel %vm696, %v644, 0
        %v761 = vsel %vm696, %v645, 0
        %v764 = vsel %vm696, %v646, 0
        %v767 = vsel %vm696, %v647, 0
        %v770 = vsel %vm696, %v648, 0
        %v773 = vsel %vm696, %v649, 0
        %v776 = vsel %vm696, %v650, 0
        %v779 = vsel %vm696, %v651, 0
        %v782 = vsel %vm696, %v652, 0
        %v785 = vsel %vm696, %v653, 0
        %v788 = vsel %vm696, %v654, 0
        %v791 = vsel %vm696, %v655, 0
        %v794 = vsel %vm696, %v656, 0
        %v797 = vsel %vm696, %v657, 0
        %799 = vmatprep.subr.bf16.mxu0 0
        %800 = vmatpush1.bf16.xpose.msra.mxu0 %v725
        %801 = vmatprep.subr.bf16.mxu0 0
        %802 = vmatpush1.bf16.xpose.msra.mxu0 %v722
        %803 = vmatprep.subr.bf16.mxu0 0
        %804 = vmatpush1.bf16.xpose.msra.mxu0 %v719
        %805 = vmatprep.subr.bf16.mxu0 0
        %806 = vmatpush1.bf16.xpose.msra.mxu0 %v716
        %807 = vmatprep.subr.bf16.mxu0 0
        %808 = vmatpush1.bf16.xpose.msra.mxu0 %v713
        %809 = vmatprep.subr.bf16.mxu0 0
        %810 = vmatpush1.bf16.xpose.msra.mxu0 %v710
        %811 = vmatprep.subr.bf16.mxu0 0
        %812 = vmatpush1.bf16.xpose.msra.mxu0 %v707
        %813 = vmatprep.subr.bf16.mxu0 0
        %814 = vmatpush1.bf16.xpose.msra.mxu0 %v704
        %815 = vmatprep.subr.bf16.mxu0 0
        %816 = vmatpush2.bf16.xpose.msra.mxu0 %v749
        %817 = vmatprep.subr.bf16.mxu0 0
        %818 = vmatpush2.bf16.xpose.msra.mxu0 %v746
        %819 = vmatprep.subr.bf16.mxu0 0
        %820 = vmatpush2.bf16.xpose.msra.mxu0 %v743
        %821 = vmatprep.subr.bf16.mxu0 0
        %822 = vmatpush2.bf16.xpose.msra.mxu0 %v740
        %823 = vmatprep.subr.bf16.mxu0 0
        %824 = vmatpush2.bf16.xpose.msra.mxu0 %v737
        %825 = vmatprep.subr.bf16.mxu0 0
        %826 = vmatpush2.bf16.xpose.msra.mxu0 %v734
        %827 = vmatprep.subr.bf16.mxu0 0
        %828 = vmatpush2.bf16.xpose.msra.mxu0 %v731
        %829 = vmatprep.subr.bf16.mxu0 0
        %830 = vmatpush2.bf16.xpose.msra.mxu0 %v728
        %831 = vmatprep.mubr.bf16.mxu0 0
        %832 = vmatmul.mubr.bf16.gmra.mxu0 %v698
        %v833 = vpop.f32.mrf.mxu0
        %v834 = vadd.f32 %v669, %v833
        %v835 = vpop.f32.mrf.mxu0
        %v836 = vadd.f32 %v669, %v835
        %v837 = vpop.f32.mrf.mxu0
        %v838 = vadd.f32 %v674, %v837
        %v839 = vpop.f32.mrf.mxu0
        %v840 = vadd.f32 %v674, %v839
        %841 = vmatprep.mubr.bf16.mxu0 0
        %842 = vmatmul.mubr.bf16.gmra.mxu0 %v701
        %v843 = vpop.f32.mrf.mxu0
        %v844 = vadd.f32 %v679, %v843
        %v845 = vpop.f32.mrf.mxu0
        %v846 = vadd.f32 %v679, %v845
        %v847 = vpop.f32.mrf.mxu0
        %v848 = vadd.f32 %v684, %v847
        %v849 = vpop.f32.mrf.mxu0
        %v850 = vadd.f32 %v684, %v849
        %851 = vdwg.mxu0
        %852 = vmatprep.subr.bf16.mxu0 0
        %853 = vmatpush1.bf16.xpose.msra.mxu0 %v773
        %854 = vmatprep.subr.bf16.mxu0 0
        %855 = vmatpush1.bf16.xpose.msra.mxu0 %v770
        %856 = vmatprep.subr.bf16.mxu0 0
        %857 = vmatpush1.bf16.xpose.msra.mxu0 %v767
        %858 = vmatprep.subr.bf16.mxu0 0
        %859 = vmatpush1.bf16.xpose.msra.mxu0 %v764
        %860 = vmatprep.subr.bf16.mxu0 0
        %861 = vmatpush1.bf16.xpose.msra.mxu0 %v761
        %862 = vmatprep.subr.bf16.mxu0 0
        %863 = vmatpush1.bf16.xpose.msra.mxu0 %v758
        %864 = vmatprep.subr.bf16.mxu0 0
        %865 = vmatpush1.bf16.xpose.msra.mxu0 %v755
        %866 = vmatprep.subr.bf16.mxu0 0
        %867 = vmatpush1.bf16.xpose.msra.mxu0 %v752
        %868 = vmatprep.subr.bf16.mxu0 0
        %869 = vmatpush2.bf16.xpose.msra.mxu0 %v797
        %870 = vmatprep.subr.bf16.mxu0 0
        %871 = vmatpush2.bf16.xpose.msra.mxu0 %v794
        %872 = vmatprep.subr.bf16.mxu0 0
        %873 = vmatpush2.bf16.xpose.msra.mxu0 %v791
        %874 = vmatprep.subr.bf16.mxu0 0
        %875 = vmatpush2.bf16.xpose.msra.mxu0 %v788
        %876 = vmatprep.subr.bf16.mxu0 0
        %877 = vmatpush2.bf16.xpose.msra.mxu0 %v785
        %878 = vmatprep.subr.bf16.mxu0 0
        %879 = vmatpush2.bf16.xpose.msra.mxu0 %v782
        %880 = vmatprep.subr.bf16.mxu0 0
        %881 = vmatpush2.bf16.xpose.msra.mxu0 %v779
        %882 = vmatprep.subr.bf16.mxu0 0
        %883 = vmatpush2.bf16.xpose.msra.mxu0 %v776
        %884 = vmatprep.mubr.bf16.mxu0 0
        %885 = vmatmul.mubr.bf16.gmra.mxu0 %v698
        %v886 = vpop.f32.mrf.mxu0
        %v887 = vadd.f32 %v669, %v886
        %v888 = vpop.f32.mrf.mxu0
        %v889 = vadd.f32 %v669, %v888
        %v890 = vpop.f32.mrf.mxu0
        %v891 = vadd.f32 %v674, %v890
        %v892 = vpop.f32.mrf.mxu0
        %v893 = vadd.f32 %v674, %v892
        %894 = vmatprep.mubr.bf16.mxu0 0
        %895 = vmatmul.mubr.bf16.gmra.mxu0 %v701
        %v896 = vpop.f32.mrf.mxu0
        %v897 = vadd.f32 %v679, %v896
        %v898 = vpop.f32.mrf.mxu0
        %v899 = vadd.f32 %v679, %v898
        %v900 = vpop.f32.mrf.mxu0
        %v901 = vadd.f32 %v684, %v900
        %v902 = vpop.f32.mrf.mxu0
        %v903 = vadd.f32 %v684, %v902
        %904 = vdwg.mxu0
        %v905 = vmax.f32 %v834, 0.0
        %v906 = vmax.f32 %v836, 0.0
        %v907 = vmax.f32 %v887, 0.0
        %v908 = vmax.f32 %v889, 0.0
        %v909 = vmax.f32 %v838, 0.0
        %v910 = vmax.f32 %v840, 0.0
        %v911 = vmax.f32 %v891, 0.0
        %v912 = vmax.f32 %v893, 0.0
        %v913 = vmax.f32 %v844, 0.0
        %v914 = vmax.f32 %v846, 0.0
        %v915 = vmax.f32 %v897, 0.0
        %v916 = vmax.f32 %v899, 0.0
        %v917 = vmax.f32 %v848, 0.0
        %v918 = vmax.f32 %v850, 0.0
        %v919 = vmax.f32 %v901, 0.0
        %v920 = vmax.f32 %v903, 0.0
        %v921 = vld [vmem:[%s3] sm:$0xf]
        %v922 = vld [vmem:[%s3 + $0x4] sm:$0xf]
        %v923 = vld [vmem:[%s3 + $0x8] sm:$0xf]
        %v924 = vld [vmem:[%s3 + $0xc] sm:$0xf]
        %v925 = vld [vmem:[%s3 + $0x10] sm:$0xf]
        %v926 = vld [vmem:[%s3 + $0x14] sm:$0xf]
        %v927 = vld [vmem:[%s3 + $0x18] sm:$0xf]
        %v928 = vld [vmem:[%s3 + $0x1c] sm:$0xf]
        %v929 = vpack.c.bf16 %v909, %v905
        %v930 = vpack.c.bf16 %v910, %v906
        %v931 = vpack.c.bf16 %v911, %v907
        %v932 = vpack.c.bf16 %v912, %v908
        %v933 = vpack.c.bf16 %v917, %v913
        %v934 = vpack.c.bf16 %v918, %v914
        %v935 = vpack.c.bf16 %v919, %v915
        %v936 = vpack.c.bf16 %v920, %v916
        %v937 = vld [vmem:[%s4] sm:$0xff]
        %v938 = vld [vmem:[%s4 + $0x8] sm:$0xff]
        %v939 = vld [vmem:[%s4 + $0x10] sm:$0xff]
        %v940 = vld [vmem:[%s4 + $0x18] sm:$0xff]
        %v941 = vld [vmem:[%s4 + $0x20] sm:$0xff]
        %v942 = vld [vmem:[%s4 + $0x28] sm:$0xff]
        %v943 = vld [vmem:[%s4 + $0x30] sm:$0xff]
        %v944 = vld [vmem:[%s4 + $0x38] sm:$0xff]
        %946 = vset.pattern.permute.xlu0 0
        %947 = vperm.xlu0 %946, %v937
        %v948 = vpop.permute.xlu0 %947
        %951 = vset.pattern.permute.xlu0 0
        %952 = vperm.xlu0 %951, %v938
        %v953 = vpop.permute.xlu0 %952
        %956 = vset.pattern.permute.xlu0 0
        %957 = vperm.xlu0 %956, %v939
        %v958 = vpop.permute.xlu0 %957
        %961 = vset.pattern.permute.xlu0 0
        %962 = vperm.xlu0 %961, %v940
        %v963 = vpop.permute.xlu0 %962
        %966 = vset.pattern.permute.xlu0 0
        %967 = vperm.xlu0 %966, %v941
        %v968 = vpop.permute.xlu0 %967
        %971 = vset.pattern.permute.xlu0 0
        %972 = vperm.xlu0 %971, %v942
        %v973 = vpop.permute.xlu0 %972
        %976 = vset.pattern.permute.xlu0 0
        %977 = vperm.xlu0 %976, %v943
        %v978 = vpop.permute.xlu0 %977
        %981 = vset.pattern.permute.xlu0 0
        %982 = vperm.xlu0 %981, %v944
        %v983 = vpop.permute.xlu0 %982
        %v993 = vunpack.c.l.b16 %v921
        %v994 = vunpack.c.l.b16 %v922
        %v995 = vunpack.c.l.b16 %v923
        %v996 = vunpack.c.l.b16 %v924
        %v997 = vunpack.c.l.b16 %v925
        %v998 = vunpack.c.l.b16 %v926
        %v999 = vunpack.c.l.b16 %v927
        %v1000 = vunpack.c.l.b16 %v928
        %v1001 = vpack.c.b16 %v994, %v993
        %v1002 = vpack.c.b16 %v996, %v995
        %v1003 = vpack.c.b16 %v998, %v997
        %v1004 = vpack.c.b16 %v1000, %v999
        %vm1005 = vcmask 261120
        %v1007 = vsel %vm1005, %v1001, 0
        %v1010 = vsel %vm1005, %v1002, 0
        %v1013 = vsel %vm1005, %v1003, 0
        %v1016 = vsel %vm1005, %v1004, 0
        %1018 = vmatprep.subr.bf16.mxu0 0
        %1019 = vmatpush1.bf16.msra.mxu0 0
        %1020 = vmatprep.subr.bf16.mxu0 0
        %1021 = vmatpush1.bf16.msra.mxu0 0
        %1022 = vmatprep.subr.bf16.mxu0 0
        %1023 = vmatpush1.bf16.msra.mxu0 0
        %1024 = vmatprep.subr.bf16.mxu0 0
        %1025 = vmatpush1.bf16.msra.mxu0 0
        %1026 = vmatprep.subr.bf16.mxu0 0
        %1027 = vmatpush1.bf16.msra.mxu0 0
        %1028 = vmatprep.subr.bf16.mxu0 0
        %1029 = vmatpush1.bf16.msra.mxu0 0
        %1030 = vmatprep.subr.bf16.mxu0 %v934
        %1031 = vmatpush1.bf16.msra.mxu0 %v933
        %1032 = vmatprep.subr.bf16.mxu0 %v930
        %1033 = vmatpush1.bf16.msra.mxu0 %v929
        %1034 = vmatprep.subr.bf16.mxu0 0
        %1035 = vmatpush2.bf16.msra.mxu0 0
        %1036 = vmatprep.subr.bf16.mxu0 0
        %1037 = vmatpush2.bf16.msra.mxu0 0
        %1038 = vmatprep.subr.bf16.mxu0 0
        %1039 = vmatpush2.bf16.msra.mxu0 0
        %1040 = vmatprep.subr.bf16.mxu0 0
        %1041 = vmatpush2.bf16.msra.mxu0 0
        %1042 = vmatprep.subr.bf16.mxu0 0
        %1043 = vmatpush2.bf16.msra.mxu0 0
        %1044 = vmatprep.subr.bf16.mxu0 0
        %1045 = vmatpush2.bf16.msra.mxu0 0
        %1046 = vmatprep.subr.bf16.mxu0 0
        %1047 = vmatpush2.bf16.msra.mxu0 0
        %1048 = vmatprep.subr.bf16.mxu0 0
        %1049 = vmatpush2.bf16.msra.mxu0 0
        %1050 = vmatprep.mubr.bf16.mxu0 0
        %1051 = vmatmul.mubr.bf16.gmra.mxu0 %v1007
        %v1052 = vpop.f32.mrf.mxu0
        %v1053 = vadd.f32 %v948, %v1052
        %v1054 = vpop.f32.mrf.mxu0
        %v1055 = vadd.f32 %v948, %v1054
        %v1056 = vpop.f32.mrf.mxu0
        %v1057 = vadd.f32 %v953, %v1056
        %v1058 = vpop.f32.mrf.mxu0
        %v1059 = vadd.f32 %v953, %v1058
        %1060 = vmatprep.mubr.bf16.mxu0 0
        %1061 = vmatmul.mubr.bf16.gmra.mxu0 %v1010
        %v1062 = vpop.f32.mrf.mxu0
        %v1063 = vadd.f32 %v958, %v1062
        %v1064 = vpop.f32.mrf.mxu0
        %v1065 = vadd.f32 %v958, %v1064
        %v1066 = vpop.f32.mrf.mxu0
        %v1067 = vadd.f32 %v963, %v1066
        %v1068 = vpop.f32.mrf.mxu0
        %v1069 = vadd.f32 %v963, %v1068
        %1070 = vmatprep.mubr.bf16.mxu0 0
        %1071 = vmatmul.mubr.bf16.gmra.mxu0 %v1013
        %v1072 = vpop.f32.mrf.mxu0
        %v1073 = vadd.f32 %v968, %v1072
        %v1074 = vpop.f32.mrf.mxu0
        %v1075 = vadd.f32 %v968, %v1074
        %v1076 = vpop.f32.mrf.mxu0
        %v1077 = vadd.f32 %v973, %v1076
        %v1078 = vpop.f32.mrf.mxu0
        %v1079 = vadd.f32 %v973, %v1078
        %1080 = vmatprep.mubr.bf16.mxu0 0
        %1081 = vmatmul.mubr.bf16.gmra.mxu0 %v1016
        %v1082 = vpop.f32.mrf.mxu0
        %v1083 = vadd.f32 %v978, %v1082
        %v1084 = vpop.f32.mrf.mxu0
        %v1085 = vadd.f32 %v978, %v1084
        %v1086 = vpop.f32.mrf.mxu0
        %v1087 = vadd.f32 %v983, %v1086
        %v1088 = vpop.f32.mrf.mxu0
        %v1089 = vadd.f32 %v983, %v1088
        %1090 = vdwg.mxu0
        %1091 = vmatprep.subr.bf16.mxu0 0
        %1092 = vmatpush1.bf16.msra.mxu0 0
        %1093 = vmatprep.subr.bf16.mxu0 0
        %1094 = vmatpush1.bf16.msra.mxu0 0
        %1095 = vmatprep.subr.bf16.mxu0 0
        %1096 = vmatpush1.bf16.msra.mxu0 0
        %1097 = vmatprep.subr.bf16.mxu0 0
        %1098 = vmatpush1.bf16.msra.mxu0 0
        %1099 = vmatprep.subr.bf16.mxu0 0
        %1100 = vmatpush1.bf16.msra.mxu0 0
        %1101 = vmatprep.subr.bf16.mxu0 0
        %1102 = vmatpush1.bf16.msra.mxu0 0
        %1103 = vmatprep.subr.bf16.mxu0 %v936
        %1104 = vmatpush1.bf16.msra.mxu0 %v935
        %1105 = vmatprep.subr.bf16.mxu0 %v932
        %1106 = vmatpush1.bf16.msra.mxu0 %v931
        %1107 = vmatprep.subr.bf16.mxu0 0
        %1108 = vmatpush2.bf16.msra.mxu0 0
        %1109 = vmatprep.subr.bf16.mxu0 0
        %1110 = vmatpush2.bf16.msra.mxu0 0
        %1111 = vmatprep.subr.bf16.mxu0 0
        %1112 = vmatpush2.bf16.msra.mxu0 0
        %1113 = vmatprep.subr.bf16.mxu0 0
        %1114 = vmatpush2.bf16.msra.mxu0 0
        %1115 = vmatprep.subr.bf16.mxu0 0
        %1116 = vmatpush2.bf16.msra.mxu0 0
        %1117 = vmatprep.subr.bf16.mxu0 0
        %1118 = vmatpush2.bf16.msra.mxu0 0
        %1119 = vmatprep.subr.bf16.mxu0 0
        %1120 = vmatpush2.bf16.msra.mxu0 0
        %1121 = vmatprep.subr.bf16.mxu0 0
        %1122 = vmatpush2.bf16.msra.mxu0 0
        %1123 = vmatprep.mubr.bf16.mxu0 0
        %1124 = vmatmul.mubr.bf16.gmra.mxu0 %v1007
        %v1125 = vpop.f32.mrf.mxu0
        %v1126 = vadd.f32 %v948, %v1125
        %v1127 = vpop.f32.mrf.mxu0
        %v1128 = vadd.f32 %v948, %v1127
        %v1129 = vpop.f32.mrf.mxu0
        %v1130 = vadd.f32 %v953, %v1129
        %v1131 = vpop.f32.mrf.mxu0
        %v1132 = vadd.f32 %v953, %v1131
        %1133 = vmatprep.mubr.bf16.mxu0 0
        %1134 = vmatmul.mubr.bf16.gmra.mxu0 %v1010
        %v1135 = vpop.f32.mrf.mxu0
        %v1136 = vadd.f32 %v958, %v1135
        %v1137 = vpop.f32.mrf.mxu0
        %v1138 = vadd.f32 %v958, %v1137
        %v1139 = vpop.f32.mrf.mxu0
        %v1140 = vadd.f32 %v963, %v1139
        %v1141 = vpop.f32.mrf.mxu0
        %v1142 = vadd.f32 %v963, %v1141
        %1143 = vmatprep.mubr.bf16.mxu0 0
        %1144 = vmatmul.mubr.bf16.gmra.mxu0 %v1013
        %v1145 = vpop.f32.mrf.mxu0
        %v1146 = vadd.f32 %v968, %v1145
        %v1147 = vpop.f32.mrf.mxu0
        %v1148 = vadd.f32 %v968, %v1147
        %v1149 = vpop.f32.mrf.mxu0
        %v1150 = vadd.f32 %v973, %v1149
        %v1151 = vpop.f32.mrf.mxu0
        %v1152 = vadd.f32 %v973, %v1151
        %1153 = vmatprep.mubr.bf16.mxu0 0
        %1154 = vmatmul.mubr.bf16.gmra.mxu0 %v1016
        %v1155 = vpop.f32.mrf.mxu0
        %v1156 = vadd.f32 %v978, %v1155
        %v1157 = vpop.f32.mrf.mxu0
        %v1158 = vadd.f32 %v978, %v1157
        %v1159 = vpop.f32.mrf.mxu0
        %v1160 = vadd.f32 %v983, %v1159
        %v1161 = vpop.f32.mrf.mxu0
        %v1162 = vadd.f32 %v983, %v1161
        %1163 = vdwg.mxu0
        %v1164 = vmax.f32 %v1053, 0.0
        %v1165 = vmax.f32 %v1055, 0.0
        %v1166 = vmax.f32 %v1126, 0.0
        %v1167 = vmax.f32 %v1128, 0.0
        %v1168 = vmax.f32 %v1057, 0.0
        %v1169 = vmax.f32 %v1059, 0.0
        %v1170 = vmax.f32 %v1130, 0.0
        %v1171 = vmax.f32 %v1132, 0.0
        %v1172 = vmax.f32 %v1063, 0.0
        %v1173 = vmax.f32 %v1065, 0.0
        %v1174 = vmax.f32 %v1136, 0.0
        %v1175 = vmax.f32 %v1138, 0.0
        %v1176 = vmax.f32 %v1067, 0.0
        %v1177 = vmax.f32 %v1069, 0.0
        %v1178 = vmax.f32 %v1140, 0.0
        %v1179 = vmax.f32 %v1142, 0.0
        %v1180 = vmax.f32 %v1073, 0.0
        %v1181 = vmax.f32 %v1075, 0.0
        %v1182 = vmax.f32 %v1146, 0.0
        %v1183 = vmax.f32 %v1148, 0.0
        %v1184 = vmax.f32 %v1077, 0.0
        %v1185 = vmax.f32 %v1079, 0.0
        %v1186 = vmax.f32 %v1150, 0.0
        %v1187 = vmax.f32 %v1152, 0.0
        %v1188 = vmax.f32 %v1083, 0.0
        %v1189 = vmax.f32 %v1085, 0.0
        %v1190 = vmax.f32 %v1156, 0.0
        %v1191 = vmax.f32 %v1158, 0.0
        %v1192 = vmax.f32 %v1087, 0.0
        %v1193 = vmax.f32 %v1089, 0.0
        %v1194 = vmax.f32 %v1160, 0.0
        %v1195 = vmax.f32 %v1162, 0.0
        %v1196 = vld [vmem:[%s5] sm:$0x1]
        %v1197 = vld [vmem:[#allocation2] sm:$0x1]
        %1199 = vset.pattern.permute.xlu0 0
        %1200 = vperm.xlu0 %1199, %v1197
        %v1201 = vpop.permute.xlu0 %1200
        %v1203 = vlaneseq
        %v1204 = vshrl.u32 %v1203, 7
        %v1205 = vsub.s32 0, %v1204
        %v1206 = vrot.slane %v1201, %v1205
        %vm1207 = vcmask 523264
        %v1209 = vsel %vm1207, %v1196, 0
        %1211 = vmatprep.subr.mxu0 0.0
        %1212 = vmatpush1.msra.mxu0 0.0
        %1213 = vmatprep.subr.mxu0 0.0
        %1214 = vmatpush1.msra.mxu0 0.0
        %1215 = vmatprep.subr.mxu0 0.0
        %1216 = vmatpush1.msra.mxu0 0.0
        %1217 = vmatprep.subr.mxu0 0.0
        %1218 = vmatpush1.msra.mxu0 0.0
        %1219 = vmatprep.subr.mxu0 0.0
        %1220 = vmatpush1.msra.mxu0 0.0
        %1221 = vmatprep.subr.mxu0 0.0
        %1222 = vmatpush1.msra.mxu0 0.0
        %1223 = vmatprep.subr.mxu0 0.0
        %1224 = vmatpush1.msra.mxu0 0.0
        %1225 = vmatprep.subr.mxu0 0.0
        %1226 = vmatpush1.msra.mxu0 0.0
        %1227 = vmatprep.subr.mxu0 %v1193
        %1228 = vmatpush1.msra.mxu0 %v1192
        %1229 = vmatprep.subr.mxu0 %v1189
        %1230 = vmatpush1.msra.mxu0 %v1188
        %1231 = vmatprep.subr.mxu0 %v1185
        %1232 = vmatpush1.msra.mxu0 %v1184
        %1233 = vmatprep.subr.mxu0 %v1181
        %1234 = vmatpush1.msra.mxu0 %v1180
        %1235 = vmatprep.subr.mxu0 %v1177
        %1236 = vmatpush1.msra.mxu0 %v1176
        %1237 = vmatprep.subr.mxu0 %v1173
        %1238 = vmatpush1.msra.mxu0 %v1172
        %1239 = vmatprep.subr.mxu0 %v1169
        %1240 = vmatpush1.msra.mxu0 %v1168
        %1241 = vmatprep.subr.mxu0 %v1165
        %1242 = vmatpush1.msra.mxu0 %v1164
        %1243 = vmatprep.subr.mxu0 0.0
        %1244 = vmatpush2.msra.mxu0 0.0
        %1245 = vmatprep.subr.mxu0 0.0
        %1246 = vmatpush2.msra.mxu0 0.0
        %1247 = vmatprep.subr.mxu0 0.0
        %1248 = vmatpush2.msra.mxu0 0.0
        %1249 = vmatprep.subr.mxu0 0.0
        %1250 = vmatpush2.msra.mxu0 0.0
        %1251 = vmatprep.subr.mxu0 0.0
        %1252 = vmatpush2.msra.mxu0 0.0
        %1253 = vmatprep.subr.mxu0 0.0
        %1254 = vmatpush2.msra.mxu0 0.0
        %1255 = vmatprep.subr.mxu0 0.0
        %1256 = vmatpush2.msra.mxu0 0.0
        %1257 = vmatprep.subr.mxu0 0.0
        %1258 = vmatpush2.msra.mxu0 0.0
        %1259 = vmatprep.subr.mxu0 0.0
        %1260 = vmatpush2.msra.mxu0 0.0
        %1261 = vmatprep.subr.mxu0 0.0
        %1262 = vmatpush2.msra.mxu0 0.0
        %1263 = vmatprep.subr.mxu0 0.0
        %1264 = vmatpush2.msra.mxu0 0.0
        %1265 = vmatprep.subr.mxu0 0.0
        %1266 = vmatpush2.msra.mxu0 0.0
        %1267 = vmatprep.subr.mxu0 0.0
        %1268 = vmatpush2.msra.mxu0 0.0
        %1269 = vmatprep.subr.mxu0 0.0
        %1270 = vmatpush2.msra.mxu0 0.0
        %1271 = vmatprep.subr.mxu0 0.0
        %1272 = vmatpush2.msra.mxu0 0.0
        %1273 = vmatprep.subr.mxu0 0.0
        %1274 = vmatpush2.msra.mxu0 0.0
        %1275 = vmatprep.mubr.f32.mxu0 0.0
        %1276 = vmatmul.mubr.f32.gmra.mxu0 %v1209
        %v1277 = vpop.f32.mrf.mxu0
        %v1278 = vadd.f32 %v1206, %v1277
        %v1279 = vpop.f32.mrf.mxu0
        %v1280 = vadd.f32 %v1206, %v1279
        %1281 = vdwg.mxu0
        %1282 = vmatprep.subr.mxu0 0.0
        %1283 = vmatpush1.msra.mxu0 0.0
        %1284 = vmatprep.subr.mxu0 0.0
        %1285 = vmatpush1.msra.mxu0 0.0
        %1286 = vmatprep.subr.mxu0 0.0
        %1287 = vmatpush1.msra.mxu0 0.0
        %1288 = vmatprep.subr.mxu0 0.0
        %1289 = vmatpush1.msra.mxu0 0.0
        %1290 = vmatprep.subr.mxu0 0.0
        %1291 = vmatpush1.msra.mxu0 0.0
        %1292 = vmatprep.subr.mxu0 0.0
        %1293 = vmatpush1.msra.mxu0 0.0
        %1294 = vmatprep.subr.mxu0 0.0
        %1295 = vmatpush1.msra.mxu0 0.0
        %1296 = vmatprep.subr.mxu0 0.0
        %1297 = vmatpush1.msra.mxu0 0.0
        %1298 = vmatprep.subr.mxu0 %v1195
        %1299 = vmatpush1.msra.mxu0 %v1194
        %1300 = vmatprep.subr.mxu0 %v1191
        %1301 = vmatpush1.msra.mxu0 %v1190
        %1302 = vmatprep.subr.mxu0 %v1187
        %1303 = vmatpush1.msra.mxu0 %v1186
        %1304 = vmatprep.subr.mxu0 %v1183
        %1305 = vmatpush1.msra.mxu0 %v1182
        %1306 = vmatprep.subr.mxu0 %v1179
        %1307 = vmatpush1.msra.mxu0 %v1178
        %1308 = vmatprep.subr.mxu0 %v1175
        %1309 = vmatpush1.msra.mxu0 %v1174
        %1310 = vmatprep.subr.mxu0 %v1171
        %1311 = vmatpush1.msra.mxu0 %v1170
        %1312 = vmatprep.subr.mxu0 %v1167
        %1313 = vmatpush1.msra.mxu0 %v1166
        %1314 = vmatprep.subr.mxu0 0.0
        %1315 = vmatpush2.msra.mxu0 0.0
        %1316 = vmatprep.subr.mxu0 0.0
        %1317 = vmatpush2.msra.mxu0 0.0
        %1318 = vmatprep.subr.mxu0 0.0
        %1319 = vmatpush2.msra.mxu0 0.0
        %1320 = vmatprep.subr.mxu0 0.0
        %1321 = vmatpush2.msra.mxu0 0.0
        %1322 = vmatprep.subr.mxu0 0.0
        %1323 = vmatpush2.msra.mxu0 0.0
        %1324 = vmatprep.subr.mxu0 0.0
        %1325 = vmatpush2.msra.mxu0 0.0
        %1326 = vmatprep.subr.mxu0 0.0
        %1327 = vmatpush2.msra.mxu0 0.0
        %1328 = vmatprep.subr.mxu0 0.0
        %1329 = vmatpush2.msra.mxu0 0.0
        %1330 = vmatprep.subr.mxu0 0.0
        %1331 = vmatpush2.msra.mxu0 0.0
        %1332 = vmatprep.subr.mxu0 0.0
        %1333 = vmatpush2.msra.mxu0 0.0
        %1334 = vmatprep.subr.mxu0 0.0
        %1335 = vmatpush2.msra.mxu0 0.0
        %1336 = vmatprep.subr.mxu0 0.0
        %1337 = vmatpush2.msra.mxu0 0.0
        %1338 = vmatprep.subr.mxu0 0.0
        %1339 = vmatpush2.msra.mxu0 0.0
        %1340 = vmatprep.subr.mxu0 0.0
        %1341 = vmatpush2.msra.mxu0 0.0
        %1342 = vmatprep.subr.mxu0 0.0
        %1343 = vmatpush2.msra.mxu0 0.0
        %1344 = vmatprep.subr.mxu0 0.0
        %1345 = vmatpush2.msra.mxu0 0.0
        %1346 = vmatprep.mubr.f32.mxu0 0.0
        %1347 = vmatmul.mubr.f32.gmra.mxu0 %v1209
        %v1348 = vpop.f32.mrf.mxu0
        %v1349 = vadd.f32 %v1206, %v1348
        %v1350 = vpop.f32.mrf.mxu0
        %v1351 = vadd.f32 %v1206, %v1350
        %1352 = vdwg.mxu0
        %v1353 = vxor.u32 %v1278, 2147483648
        %v1354 = vxor.u32 %v1280, 2147483648
        %v1355 = vxor.u32 %v1349, 2147483648
        %v1356 = vxor.u32 %v1351, 2147483648
        %v1357 = vmul.f32 %v1353, 1.442695
        %v1358 = vpow.pop %v1357
        %v1359 = vmul.f32 %v1354, 1.442695
        %v1360 = vpow.pop %v1359
        %v1361 = vmul.f32 %v1355, 1.442695
        %v1362 = vpow.pop %v1361
        %v1363 = vmul.f32 %v1356, 1.442695
        %v1364 = vpow.pop %v1363
        %v1365 = vadd.f32 %v1358, 1.0
        %v1366 = vadd.f32 %v1360, 1.0
        %v1367 = vadd.f32 %v1362, 1.0
        %v1368 = vadd.f32 %v1364, 1.0
        %v1369 = vrcp.pop %v1365
        %v1370 = vmul.f32 1.0, %v1369
        %v1371 = vrcp.pop %v1366
        %v1372 = vmul.f32 1.0, %v1371
        %v1373 = vrcp.pop %v1367
        %v1374 = vmul.f32 1.0, %v1373
        %v1375 = vrcp.pop %v1368
        %v1376 = vmul.f32 1.0, %v1375
        %v1381 = vcombine.low %v1370, %v1372
        %v1382 = vcombine.low %v1374, %v1376
        %v1384 = vunpack.c.l.s4 1966171168
        %v1385 = vunpack.c.0.s8 %v1384
        %v1386 = vlaneseq
        %v1387 = vshrl.u32 %v1386, 7
        %v1388 = vsub.s32 %v1385, %v1387
        %v1389 = vrot.slane %v1381, %v1388
        %v1391 = vunpack.c.l.s4 1966171168
        %v1392 = vunpack.c.0.s8 %v1391
        %v1393 = vlaneseq
        %v1394 = vshrl.u32 %v1393, 7
        %v1395 = vsub.s32 %v1392, %v1394
        %v1396 = vrot.slane %v1382, %v1395
        %v1397 = vcombine.low %v1389, %v1396
        %v1399 = vunpack.c.l.s4 1966171168
        %v1400 = vunpack.c.0.s8 %v1399
        %v1401 = vlaneseq
        %v1402 = vshrl.u32 %v1401, 7
        %v1403 = vsub.s32 %v1400, %v1402
        %v1404 = vrot.slane %v1397, %v1403
        %v1406 = vlaneseq
        %vm1407 = vcmp.ge.s32.totalorder %v1406, 0
        %vm1408 = vcmp.lt.s32.totalorder %v1406, 512
        %vm1409 = vmand %vm1407, %vm1408
        %1410 = vst.msk [vmem:[%s286] sm:$0xf] %vm1409, %v1404
        %s1411 = sand.u32 %s183, 1
        %s1412 = scalar_lea.sflag [#allocation4], %s1411
        %s1413 = sand.u32 %s183, 1
        %s1414 = smul.addr %s1413, 4
        %s1415 = scalar_lea.vmem [#allocation3], %s1414
        // Predicated region
        $region49: #{tpu_custom_call.1} parent=47 // pred_check
          %p1416 = pneg %p193
        $region50: #{tpu_custom_call.1} parent=47 // pred_check_branch
          %1418 = sbr.rel (%p1416) target = $region52
        $region51: #{tpu_custom_call.1} parent=47 // pred_region
          %s1419 = smul.u32 4, %s23
          %s1421 = ssub.s32 64, 64
          %1422 = vsyncadd %s1412, %s1421
          %s1423 = smul.addr %s1419, 16
          %s1424 = scalar_lea.hbm %s7, %s1423
          %s1426 = sshll.u32 %s1415, 4
          %s1427 = int_to_ptr.vmem [resolvable:$true] %s1426
          %1429 = dma.vmem_to_hbm [thread:$0]  %s1427, 64, %s1424, %s1412
        $region52: #{tpu_custom_call.1} parent=47 // pred_fallthru
          _
      $region48: #{tpu_custom_call.1} parent=5 // pred_fallthru
        _
      %p1430 = scmp.le.s32.totalorder 2, %s18
      // Predicated region
      $region53: #{tpu_custom_call.1} parent=5 // pred_check
        %p1431 = pneg %p1430
      $region54: #{tpu_custom_call.1} parent=5 // pred_check_branch
        %1433 = sbr.rel (%p1431) target = $region56
      $region55: #{tpu_custom_call.1} parent=5 // pred_region
        %s1434 = ssub.s32 %s18, 2
        // Predicated region
        $region57: #{tpu_custom_call.1} parent=55 // pred_check
          %p1435 = pneg %p199
        $region58: #{tpu_custom_call.1} parent=55 // pred_check_branch
          %1437 = sbr.rel (%p1435) target = $region60
        $region59: #{tpu_custom_call.1} parent=55 // pred_region
          %s1438 = sand.u32 %s184, 1
          %s1439 = scalar_lea.sflag [#allocation4], %s1438
          %s1440 = sand.u32 %s184, 1
          %s1441 = smul.addr %s1440, 4
          %s1442 = scalar_lea.vmem [#allocation3], %s1441
          %1443 = dma.done %s1439, 64
        $region60: #{tpu_custom_call.1} parent=55 // pred_fallthru
          _
      $region56: #{tpu_custom_call.1} parent=5 // pred_fallthru
        _
    $region6: #{tpu_custom_call.1} parent=1 // loop_footer
      %s22 = sadd.s32 1, %s18
    $region7: #{tpu_custom_call.1} parent=1 // loop_footer_branch
      %17 = sbr.rel target = $region3
    $region8: #{tpu_custom_call.1} parent=1 // loop_exit
      _
    %1444 = vsyncpa [#allocation4], 1
    %s1445 = scalar_lea.sflag [#allocation4], 1
    %1446 = vsyncpa %s1445, 1

</llo_original>
